<compile_context>
chip_gen: v6e
topology: v6e:2x2x1
jax: 0.10.0
libtpu: 0.0.40
codegen_flags: <defaults>
</compile_context>

<pallas_src>
import functools

import jax
import jax.numpy as jnp
from jax import lax
from jax.experimental import pallas as pl
from jax.experimental.pallas import tpu as pltpu


def _round_up(x: int, m: int) -> int:
    return ((x + m - 1) // m) * m


def _dense_kernel(x_ref, w_ref, o_ref, *, k_size, k_tile, mask_k):
    # x_ref: (TM, TK) activations (native dtype, cast to bf16 at load)
    # w_ref: (TK, TN) bf16 weight (pre-transposed nn.Linear weight)
    # o_ref: (TM, TN) f32 output block, resident across the k grid axis.
    k = pl.program_id(2)

    @pl.when(k == 0)
    def _():
        o_ref[...] = jnp.zeros_like(o_ref)

    xb = x_ref[...].astype(jnp.bfloat16)
    wb = w_ref[...]

    if mask_k:
        # Zero the K tail of both operands on the ragged last k block so
        # out-of-bounds garbage (possibly NaN/Inf) cannot pollute the sum.
        lim = k_size - k * k_tile
        col = lax.broadcasted_iota(jnp.int32, xb.shape, 1)
        row = lax.broadcasted_iota(jnp.int32, wb.shape, 0)
        xb = jnp.where(col < lim, xb, jnp.zeros_like(xb))
        wb = jnp.where(row < lim, wb, jnp.zeros_like(wb))

    # bf16 x bf16 on the MXU, f32 accumulate directly into the output block.
    o_ref[...] += jnp.dot(xb, wb, preferred_element_type=jnp.float32)


def prepare_dense_weight(weight):
    """One-time weight preparation (hoist out of the per-call forward path).

    nn.Linear layout (out_dim, in_dim) -> (in_dim, out_dim), bf16 for the MXU.
    """
    return jnp.asarray(weight).T.astype(jnp.bfloat16)


@functools.partial(jax.jit, static_argnames=("tm", "tn", "tk"))
def dense_forward(x, w_kn, *, tm=512, tn=512, tk=1024):
    """Equivalent of nn.Linear(in_dim, out_dim, bias=False)(x).

    x:    (..., in_dim)
    w_kn: (in_dim, out_dim) bf16 -- output of prepare_dense_weight(weight)
    returns (..., out_dim) in float32.
    """
    in_dim = x.shape[-1]
    assert w_kn.shape[0] == in_dim
    out_dim = w_kn.shape[1]
    lead = x.shape[:-1]

    x2d = x.reshape(-1, in_dim)           # (M, K)
    M, K = x2d.shape
    N = out_dim

    # Clamp MXU-friendly defaults to the (aligned) problem size so small
    # problems run as a single block; alignment keeps blocks (8, 128)-legal.
    TM = min(tm, _round_up(M, 8))
    TN = min(tn, _round_up(N, 128))       # lane-dense output tiles
    TK = min(tk, _round_up(K, 128))

    grid = (pl.cdiv(M, TM), pl.cdiv(N, TN), pl.cdiv(K, TK))
    mask_k = (K % TK) != 0                # static: only mask when K is ragged

    kernel = functools.partial(_dense_kernel, k_size=K, k_tile=TK, mask_k=mask_k)

    flops = 2 * M * N * K
    bytes_accessed = (
        x2d.size * x2d.dtype.itemsize
        + w_kn.size * w_kn.dtype.itemsize
        + M * N * 4
    )

    y = pl.pallas_call(
        kernel,
        out_shape=jax.ShapeDtypeStruct((M, N), jnp.float32),
        grid_spec=pltpu.PrefetchScalarGridSpec(
            num_scalar_prefetch=0,
            grid=grid,
            in_specs=[
                pl.BlockSpec((TM, TK), lambda i, j, k: (i, k)),   # activations
                pl.BlockSpec((TK, TN), lambda i, j, k: (k, j)),   # weight (K, N)
            ],
            out_specs=pl.BlockSpec((TM, TN), lambda i, j, k: (i, j)),
        ),
        compiler_params=pltpu.CompilerParams(
            # "parallel" M/N axes shard across TensorCores on multi-TC chips.
            dimension_semantics=("parallel", "parallel", "arbitrary"),
            vmem_limit_bytes=48 * 1024 * 1024,   # within v7x's 64 MiB/TC
        ),
        cost_estimate=pl.CostEstimate(
            flops=flops, transcendentals=0, bytes_accessed=bytes_accessed
        ),
    )(x2d, w_kn)

    return y.reshape(*lead, N)


if __name__ == "__main__":
    # Small shapes consistent with the module: batch=2, seq=8, in_dim=32, out_dim=32.
    in_dim, out_dim = 32, 32
    key = jax.random.PRNGKey(0)
    x = jax.random.normal(key, (2, 8, in_dim), dtype=jnp.float32)

    # Deterministic parameter init matching reset_parameters(): weight = ones
    # in nn.Linear layout (out_dim, in_dim); prepared once, outside forward.
    weight = jnp.ones((out_dim, in_dim), dtype=jnp.float32)
    w_kn = prepare_dense_weight(weight)

    y = dense_forward(x, w_kn)
    jax.block_until_ready(y)

    # Reference with bf16-rounded operands (the MXU path) and f32 accumulation.
    ref = jnp.einsum(
        "bsk,nk->bsn",
        x.astype(jnp.bfloat16).astype(jnp.float32),
        weight.astype(jnp.bfloat16).astype(jnp.float32),
        precision=lax.Precision.HIGHEST,
    )
    assert y.shape == (2, 8, out_dim)
    assert jnp.allclose(y, ref, atol=1e-3, rtol=1e-3), float(jnp.max(jnp.abs(y - ref)))

    # Secondary check: multi-block grid, ragged M/N edges, and K-tail masking.
    k1, k2 = jax.random.split(key)
    x2 = jax.random.normal(k1, (4, 130, 1300), dtype=jnp.float32)
    w2 = 0.05 * jax.random.normal(k2, (300, 1300), dtype=jnp.float32)
    y2 = dense_forward(x2, prepare_dense_weight(w2))
    jax.block_until_ready(y2)
    ref2 = jnp.einsum(
        "bsk,nk->bsn",
        x2.astype(jnp.bfloat16).astype(jnp.float32),
        w2.astype(jnp.bfloat16).astype(jnp.float32),
        precision=lax.Precision.HIGHEST,
    )
    assert y2.shape == (4, 130, 300)
    max_err = float(jnp.max(jnp.abs(y2 - ref2)))
    tol = 1e-2 * float(jnp.max(jnp.abs(ref2))) + 1e-3
    assert max_err <= tol, (max_err, tol)

    print("KERNEL_OK")
</pallas_src>

<mosaic_0001>
module attributes {stable_mosaic.version = 11 : i64} {
  func.func @_dense_kernel(%arg0: i32, %arg1: i32, %arg2: i32, %arg3: memref<16x128xf32, #tpu.memory_space<vmem>>, %arg4: memref<128x128xbf16, #tpu.memory_space<vmem>>, %arg5: memref<16x128xf32, #tpu.memory_space<vmem>>) attributes {dimension_semantics = [#tpu.dimension_semantics<parallel>, #tpu.dimension_semantics<parallel>, #tpu.dimension_semantics<arbitrary>], iteration_bounds = array<i64: 1, 1, 1>, scalar_prefetch = 0 : i64, scratch_operands = 0 : i64, tpu.core_type = #tpu.core_type<tc>, window_params = [{transform_indices = @transform_0, window_bounds = array<i64: 16, 128>}, {transform_indices = @transform_1, window_bounds = array<i64: 128, 128>}, {transform_indices = @transform_2, window_bounds = array<i64: 16, 128>}]} {
    %c0_i32 = arith.constant 0 : i32
    %0 = arith.cmpi eq, %arg2, %c0_i32 : i32
    %1 = arith.extui %0 : i1 to i32
    %c0_i32_0 = arith.constant 0 : i32
    %2 = arith.cmpi ne, %1, %c0_i32_0 : i32
    scf.if %2 {
      %cst_10 = arith.constant 0.000000e+00 : f32
      %22 = vector.broadcast %cst_10 : f32 to vector<16x128xf32>
      %c0_11 = arith.constant 0 : index
      %c0_12 = arith.constant 0 : index
      %23 = vector.load %arg5[%c0_11, %c0_12] : memref<16x128xf32, #tpu.memory_space<vmem>>, vector<16x128xf32>
      tpu.vector_store %arg5[%c0_11, %c0_12], %22 {strides = array<i32>} : memref<16x128xf32, #tpu.memory_space<vmem>>, vector<16x128xf32>,
    } else {
    }
    %c0 = arith.constant 0 : index
    %c0_1 = arith.constant 0 : index
    %3 = vector.load %arg3[%c0, %c0_1] : memref<16x128xf32, #tpu.memory_space<vmem>>, vector<16x128xf32>
    %4 = arith.truncf %3 : vector<16x128xf32> to vector<16x128xbf16>
    %c0_2 = arith.constant 0 : index
    %c0_3 = arith.constant 0 : index
    %5 = vector.load %arg4[%c0_2, %c0_3] : memref<128x128xbf16, #tpu.memory_space<vmem>>, vector<128x128xbf16>
    %c128_i32 = arith.constant 128 : i32
    %6 = arith.muli %arg2, %c128_i32 : i32
    %c32_i32 = arith.constant 32 : i32
    %7 = arith.subi %c32_i32, %6 : i32
    %8 = tpu.iota {dimensions = array<i32: 1>} : vector<16x128xi32>
    %9 = tpu.iota {dimensions = array<i32: 0>} : vector<128x128xi32>
    %10 = vector.broadcast %7 : i32 to vector<16x128xi32>
    %11 = arith.cmpi slt, %8, %10 : vector<16x128xi32>
    %cst = arith.constant 0.000000e+00 : bf16
    %12 = vector.broadcast %cst : bf16 to vector<16x128xbf16>
    %13 = arith.select %11, %4, %12 : vector<16x128xi1>, vector<16x128xbf16>
    %14 = vector.broadcast %7 : i32 to vector<128x128xi32>
    %15 = arith.cmpi slt, %9, %14 : vector<128x128xi32>
    %cst_4 = arith.constant 0.000000e+00 : bf16
    %16 = vector.broadcast %cst_4 : bf16 to vector<128x128xbf16>
    %17 = arith.select %15, %5, %16 : vector<128x128xi1>, vector<128x128xbf16>
    %c0_5 = arith.constant 0 : index
    %c0_6 = arith.constant 0 : index
    %18 = vector.load %arg5[%c0_5, %c0_6] : memref<16x128xf32, #tpu.memory_space<vmem>>, vector<16x128xf32>
    %cst_7 = arith.constant dense<0.000000e+00> : vector<16x128xf32>
    %19 = tpu.matmul %13, %17, %cst_7 {dimension_numbers = #tpu.dot_dimension_numbers<[1], [0], [0], [1], [0, 0, 1, 1], [], []>} : vector<16x128xbf16>, vector<128x128xbf16>, vector<16x128xf32> -> vector<16x128xf32>
    %20 = arith.addf %18, %19 : vector<16x128xf32>
    %c0_8 = arith.constant 0 : index
    %c0_9 = arith.constant 0 : index
    %21 = vector.load %arg5[%c0_8, %c0_9] : memref<16x128xf32, #tpu.memory_space<vmem>>, vector<16x128xf32>
    tpu.vector_store %arg5[%c0_8, %c0_9], %20 {strides = array<i32>} : memref<16x128xf32, #tpu.memory_space<vmem>>, vector<16x128xf32>,
    return
  }
  func.func @transform_0(%arg0: i32, %arg1: i32, %arg2: i32) -> (i32, i32) {
    %c0_i32 = arith.constant 0 : i32
    return %arg0, %arg2 : i32, i32
  }
  func.func @transform_1(%arg0: i32, %arg1: i32, %arg2: i32) -> (i32, i32) {
    %c0_i32 = arith.constant 0 : i32
    return %arg2, %arg1 : i32, i32
  }
  func.func @transform_2(%arg0: i32, %arg1: i32, %arg2: i32) -> (i32, i32) {
    %c0_i32 = arith.constant 0 : i32
    return %arg0, %arg1 : i32, i32
  }
}

</mosaic_0001>

<llo_original>
// kernel: dense_forward.1
$region0: #{dense_forward.1}
  #allocation0 [shape = 'u32[]', space=smem, size = 0x4, offset = 0x4, fixed_abs, tag = 'smem constant byte address 0x4 - core index']
  #allocation1 [shape = 'u32[144,128]{1,0:T(1,128)}', space=vmem, size = 0x12000, scoped, tag = 'internal scratch']
  %s0 = inlined_call_operand.hbm [shape: f32[16,32], index: 0, kind: input, shape index: {}]
  %s1 = inlined_call_operand.hbm [shape: bf16[32,32], index: 1, kind: input, shape index: {}]
  %s2 = inlined_call_operand.hbm [shape: f32[16,32], index: 2, kind: output, shape index: {}]
  %s3 = sld [smem:[#allocation0]]
  $region30: #{dense_forward.1} parent=0
    _
  %s5 = ssub.s32 1, %s3
  %s6 = scalar_select 0, %s5, %s3
  $region1: #{dense_forward.1} parent=0
    #allocation2 [shape = 'u8[8192]{0}', space=vmem, size = 0x2000, scoped, tag = 'input window, operand 0, single buffered']
    #allocation3 [shape = 's32[1]{0}', space=sflag, size = 0x4, scoped, tag = 'scoped memory for dense_forward.1']
    #allocation4 [shape = 's32[1]{0}', space=sflag, size = 0x4, scoped, tag = 'scoped memory for dense_forward.1']
    #allocation5 [shape = 'u8[32768]{0}', space=vmem, size = 0x8000, scoped, tag = 'input window, operand 1, single buffered']
    #allocation6 [shape = 's32[1]{0}', space=sflag, size = 0x4, scoped, tag = 'scoped memory for dense_forward.1']
    #allocation7 [shape = 'u8[8192]{0}', space=vmem, size = 0x2000, scoped, tag = 'output window, operand 0, single buffered']
    %7 = vsyncpa [#allocation3], 0
    %8 = vsyncpa [#allocation6], 0
    %9 = vsyncpa [#allocation4], 0
    // Predicated region
    $region2: #{dense_forward.1} parent=1 // pred_check
      _
    $region3: #{dense_forward.1} parent=1 // pred_check_branch
      %11 = sbr.rel (0) target = $region5
    $region4: #{dense_forward.1} parent=1 // pred_region
      %s13 = ssub.s32 256, 256
      %14 = vsyncadd [#allocation3], %s13
      %s15 = sshll.u32 [#allocation2], 4
      %s16 = int_to_ptr.vmem [resolvable:$true] %s15
      %21 = dma.hbm_to_vmem [thread:$0]  %s0, 256, %s16, [#allocation3], 128, 128, 8
    $region5: #{dense_forward.1} parent=1 // pred_fallthru
      _
    // Predicated region
    $region6: #{dense_forward.1} parent=1 // pred_check
      _
    $region7: #{dense_forward.1} parent=1 // pred_check_branch
      %23 = sbr.rel (0) target = $region9
    $region8: #{dense_forward.1} parent=1 // pred_region
      %s25 = ssub.s32 1024, 256
      %26 = vsyncadd [#allocation6], %s25
      %s27 = sshll.u32 [#allocation5], 4
      %s28 = int_to_ptr.vmem [resolvable:$true] %s27
      %33 = dma.hbm_to_vmem [thread:$0]  %s1, 256, %s28, [#allocation6], 64, 64, 4
    $region9: #{dense_forward.1} parent=1 // pred_fallthru
      _
    // Predicated region
    $region10: #{dense_forward.1} parent=1 // pred_check
      _
    $region11: #{dense_forward.1} parent=1 // pred_check_branch
      %35 = sbr.rel (0) target = $region13
    $region12: #{dense_forward.1} parent=1 // pred_region
      %36 = dma.done [#allocation3], 256
    $region13: #{dense_forward.1} parent=1 // pred_fallthru
      _
    // Predicated region
    $region14: #{dense_forward.1} parent=1 // pred_check
      _
    $region15: #{dense_forward.1} parent=1 // pred_check_branch
      %38 = sbr.rel (0) target = $region17
    $region16: #{dense_forward.1} parent=1 // pred_region
      %39 = dma.done [#allocation6], 1024
    $region17: #{dense_forward.1} parent=1 // pred_fallthru
      _
    %p43 = scmp.eq.s32.totalorder 0, 0
    // Predicated region
    $region18: #{dense_forward.1} parent=1 // pred_check
      %p44 = pneg %p43
    $region19: #{dense_forward.1} parent=1 // pred_check_branch
      %46 = sbr.rel (%p44) target = $region21
    $region20: #{dense_forward.1} parent=1 // pred_region
      %47 = vst [vmem:[#allocation7] sm:$0xff] 0.0
      %48 = vst [vmem:[#allocation7 + $0x8] sm:$0xff] 0.0
    $region21: #{dense_forward.1} parent=1 // pred_fallthru
      _
    %v49 = vld [vmem:[#allocation2] sm:$0xff]
    %v50 = vld [vmem:[#allocation2 + $0x8] sm:$0xff]
    %v51 = vpack.c.bf16 %v50, %v49
    %v52 = vld [vmem:[#allocation5] sm:$0xf]
    %v53 = vld [vmem:[#allocation5 + $0x4] sm:$0xf]
    %v54 = vld [vmem:[#allocation5 + $0x8] sm:$0xf]
    %v55 = vld [vmem:[#allocation5 + $0xc] sm:$0xf]
    %v56 = vld [vmem:[#allocation5 + $0x10] sm:$0xf]
    %v57 = vld [vmem:[#allocation5 + $0x14] sm:$0xf]
    %v58 = vld [vmem:[#allocation5 + $0x18] sm:$0xf]
    %v59 = vld [vmem:[#allocation5 + $0x1c] sm:$0xf]
    %v60 = vld [vmem:[#allocation5 + $0x20] sm:$0xf]
    %v61 = vld [vmem:[#allocation5 + $0x24] sm:$0xf]
    %v62 = vld [vmem:[#allocation5 + $0x28] sm:$0xf]
    %v63 = vld [vmem:[#allocation5 + $0x2c] sm:$0xf]
    %v64 = vld [vmem:[#allocation5 + $0x30] sm:$0xf]
    %v65 = vld [vmem:[#allocation5 + $0x34] sm:$0xf]
    %v66 = vld [vmem:[#allocation5 + $0x38] sm:$0xf]
    %v67 = vld [vmem:[#allocation5 + $0x3c] sm:$0xf]
    %s68 = smul.u32 0, 128
    %s69 = ssub.s32 32, %s68
    %v70 = vlaneseq
    %v71 = vand.u32 %v70, 127
    %v72 = vlaneseq
    %v73 = vshrl.u32 %v72, 7
    %v74 = vadd.s32 %v73, 8
    %v75 = vadd.s32 %v73, 16
    %v76 = vadd.s32 %v73, 24
    %v77 = vadd.s32 %v73, 32
    %v78 = vadd.s32 %v73, 40
    %v79 = vadd.s32 %v73, 48
    %v80 = vadd.s32 %v73, 56
    %v81 = vadd.s32 %v73, 64
    %v82 = vadd.s32 %v73, 72
    %v83 = vadd.s32 %v73, 80
    %v84 = vadd.s32 %v73, 88
    %v85 = vadd.s32 %v73, 96
    %v86 = vadd.s32 %v73, 104
    %v87 = vadd.s32 %v73, 112
    %v88 = vadd.s32 %v73, 120
    %v89 = vstv %s69
    %vm90 = vcmp.lt.s32.totalorder %v71, %v89
    %vm91 = vmpackc.low %vm90, %vm90
    %v92 = vsel %vm91, 65537, 0
    %v93 = vlaneseq
    %v94 = vshrl.u32 %v93, 7
    %v95 = vsub.s32 0, %v94
    %v96 = vrot.slane %v92, %v95
    %vm97 = vcmp.ne.s16.totalorder %v96, 0
    %v98 = vsel %vm97, %v51, 0
    %vm99 = vcmp.lt.s32.totalorder %v73, %v89
    %vm100 = vcmp.lt.s32.totalorder %v74, %v89
    %vm101 = vcmp.lt.s32.totalorder %v75, %v89
    %vm102 = vcmp.lt.s32.totalorder %v76, %v89
    %vm103 = vcmp.lt.s32.totalorder %v77, %v89
    %vm104 = vcmp.lt.s32.totalorder %v78, %v89
    %vm105 = vcmp.lt.s32.totalorder %v79, %v89
    %vm106 = vcmp.lt.s32.totalorder %v80, %v89
    %vm107 = vcmp.lt.s32.totalorder %v81, %v89
    %vm108 = vcmp.lt.s32.totalorder %v82, %v89
    %vm109 = vcmp.lt.s32.totalorder %v83, %v89
    %vm110 = vcmp.lt.s32.totalorder %v84, %v89
    %vm111 = vcmp.lt.s32.totalorder %v85, %v89
    %vm112 = vcmp.lt.s32.totalorder %v86, %v89
    %vm113 = vcmp.lt.s32.totalorder %v87, %v89
    %vm114 = vcmp.lt.s32.totalorder %v88, %v89
    %vm115 = vmpackc.low %vm99, %vm99
    %vm116 = vmpackc.low %vm100, %vm100
    %vm117 = vmpackc.low %vm101, %vm101
    %vm118 = vmpackc.low %vm102, %vm102
    %vm119 = vmpackc.low %vm103, %vm103
    %vm120 = vmpackc.low %vm104, %vm104
    %vm121 = vmpackc.low %vm105, %vm105
    %vm122 = vmpackc.low %vm106, %vm106
    %vm123 = vmpackc.low %vm107, %vm107
    %vm124 = vmpackc.low %vm108, %vm108
    %vm125 = vmpackc.low %vm109, %vm109
    %vm126 = vmpackc.low %vm110, %vm110
    %vm127 = vmpackc.low %vm111, %vm111
    %vm128 = vmpackc.low %vm112, %vm112
    %vm129 = vmpackc.low %vm113, %vm113
    %vm130 = vmpackc.low %vm114, %vm114
    %v131 = vsel %vm115, %v52, 0
    %v132 = vsel %vm116, %v53, 0
    %v133 = vsel %vm117, %v54, 0
    %v134 = vsel %vm118, %v55, 0
    %v135 = vsel %vm119, %v56, 0
    %v136 = vsel %vm120, %v57, 0
    %v137 = vsel %vm121, %v58, 0
    %v138 = vsel %vm122, %v59, 0
    %v139 = vsel %vm123, %v60, 0
    %v140 = vsel %vm124, %v61, 0
    %v141 = vsel %vm125, %v62, 0
    %v142 = vsel %vm126, %v63, 0
    %v143 = vsel %vm127, %v64, 0
    %v144 = vsel %vm128, %v65, 0
    %v145 = vsel %vm129, %v66, 0
    %v146 = vsel %vm130, %v67, 0
    %v147 = vld [vmem:[#allocation7] sm:$0xff]
    %v148 = vld [vmem:[#allocation7 + $0x8] sm:$0xff]
    %v165 = vunpack.c.l.b16 %v131
    %v166 = vunpack.c.l.b16 %v132
    %v167 = vunpack.c.l.b16 %v133
    %v168 = vunpack.c.l.b16 %v134
    %v169 = vunpack.c.l.b16 %v135
    %v170 = vunpack.c.l.b16 %v136
    %v171 = vunpack.c.l.b16 %v137
    %v172 = vunpack.c.l.b16 %v138
    %v173 = vunpack.c.l.b16 %v139
    %v174 = vunpack.c.l.b16 %v140
    %v175 = vunpack.c.l.b16 %v141
    %v176 = vunpack.c.l.b16 %v142
    %v177 = vunpack.c.l.b16 %v143
    %v178 = vunpack.c.l.b16 %v144
    %v179 = vunpack.c.l.b16 %v145
    %v180 = vunpack.c.l.b16 %v146
    %v181 = vpack.c.b16 %v166, %v165
    %v182 = vpack.c.b16 %v168, %v167
    %v183 = vpack.c.b16 %v170, %v169
    %v184 = vpack.c.b16 %v172, %v171
    %v185 = vpack.c.b16 %v174, %v173
    %v186 = vpack.c.b16 %v176, %v175
    %v187 = vpack.c.b16 %v178, %v177
    %v188 = vpack.c.b16 %v180, %v179
    %197 = vmatprep.subr.bf16.mxu0 0
    %198 = vmatpush1.bf16.msra.mxu0 %v188
    %199 = vmatprep.subr.bf16.mxu0 0
    %200 = vmatpush1.bf16.msra.mxu0 %v187
    %201 = vmatprep.subr.bf16.mxu0 0
    %202 = vmatpush1.bf16.msra.mxu0 %v186
    %203 = vmatprep.subr.bf16.mxu0 0
    %204 = vmatpush1.bf16.msra.mxu0 %v185
    %205 = vmatprep.subr.bf16.mxu0 0
    %206 = vmatpush1.bf16.msra.mxu0 %v184
    %207 = vmatprep.subr.bf16.mxu0 0
    %208 = vmatpush1.bf16.msra.mxu0 %v183
    %209 = vmatprep.subr.bf16.mxu0 0
    %210 = vmatpush1.bf16.msra.mxu0 %v182
    %211 = vmatprep.subr.bf16.mxu0 0
    %212 = vmatpush1.bf16.msra.mxu0 %v181
    %213 = vmatprep.subr.bf16.mxu0 0
    %214 = vmatpush2.bf16.msra.mxu0 0
    %215 = vmatprep.subr.bf16.mxu0 0
    %216 = vmatpush2.bf16.msra.mxu0 0
    %217 = vmatprep.subr.bf16.mxu0 0
    %218 = vmatpush2.bf16.msra.mxu0 0
    %219 = vmatprep.subr.bf16.mxu0 0
    %220 = vmatpush2.bf16.msra.mxu0 0
    %221 = vmatprep.subr.bf16.mxu0 0
    %222 = vmatpush2.bf16.msra.mxu0 0
    %223 = vmatprep.subr.bf16.mxu0 0
    %224 = vmatpush2.bf16.msra.mxu0 0
    %225 = vmatprep.subr.bf16.mxu0 0
    %226 = vmatpush2.bf16.msra.mxu0 0
    %227 = vmatprep.subr.bf16.mxu0 0
    %228 = vmatpush2.bf16.msra.mxu0 0
    %229 = vmatprep.mubr.bf16.mxu0 0
    %230 = vmatmul.mubr.bf16.gmra.mxu0 %v98
    %v231 = vpop.f32.mrf.mxu0
    %v232 = vadd.f32 0.0, %v231
    %v233 = vpop.f32.mrf.mxu0
    %v234 = vpop.f32.mrf.mxu0
    %v235 = vadd.f32 0.0, %v234
    %v236 = vpop.f32.mrf.mxu0
    %237 = vdwg.mxu0
    %v238 = vadd.f32 %v147, %v232
    %v239 = vadd.f32 %v148, %v235
    %240 = vst [vmem:[#allocation7] sm:$0xff] %v238
    %241 = vst [vmem:[#allocation7 + $0x8] sm:$0xff] %v239
    // Predicated region
    $region22: #{dense_forward.1} parent=1 // pred_check
      _
    $region23: #{dense_forward.1} parent=1 // pred_check_branch
      %243 = sbr.rel (0) target = $region25
    $region24: #{dense_forward.1} parent=1 // pred_region
      %s245 = ssub.s32 256, 256
      %246 = vsyncadd [#allocation4], %s245
      %s247 = sshll.u32 [#allocation7], 4
      %s248 = int_to_ptr.vmem [resolvable:$true] %s247
      %253 = dma.vmem_to_hbm [thread:$0]  %s248, 256, %s2, [#allocation4], 128, 128, 8
    $region25: #{dense_forward.1} parent=1 // pred_fallthru
      _
    // Predicated region
    $region26: #{dense_forward.1} parent=1 // pred_check
      _
    $region27: #{dense_forward.1} parent=1 // pred_check_branch
      %255 = sbr.rel (0) target = $region29
    $region28: #{dense_forward.1} parent=1 // pred_region
      %256 = dma.done [#allocation4], 256
    $region29: #{dense_forward.1} parent=1 // pred_fallthru
      _
    %257 = vsyncpa [#allocation3], 1
    %258 = vsyncpa [#allocation6], 1
    %259 = vsyncpa [#allocation4], 1

</llo_original>
